<compile_context>
chip_gen: v7x
topology: tpu7x:2x2x1
jax: 0.10.0
libtpu: 0.0.40
codegen_flags: <defaults>
</compile_context>

<pallas_src>
import jax
import jax.numpy as jnp
from jax.experimental import pallas as pl
from jax.experimental.pallas import tpu as pltpu


def _round_up(n, m):
    return ((n + m - 1) // m) * m


def _net_kernel(x_ref, w1_ref, b1_ref, w2_ref, b2_ref, o_ref):
    # fc1: (hidden, n_states) @ (n_states, TB) -> (hidden, TB), MXU, f32 accumulate
    h = jnp.dot(w1_ref[...], x_ref[...], preferred_element_type=jnp.float32)
    # bias + ReLU in f32 on the VPU (b1 is (hidden, 1), broadcasts over lanes)
    h = jnp.maximum(h + b1_ref[...], 0.0)
    # out: (n_actions, hidden) @ (hidden, TB) -> (n_actions, TB)
    h = h.astype(w2_ref.dtype)  # bf16 on the MXU path; no-op for f32
    o = jnp.dot(w2_ref[...], h, preferred_element_type=jnp.float32)
    o_ref[...] = (o + b2_ref[...]).astype(o_ref.dtype)


def net_forward(x, w1, b1, w2, b2, *, block_b=2048, use_bf16=True):
    """Forward pass of the DQN Net.

    x : (B, n_states) float32              (PyTorch Linear input layout)
    w1: (hidden, n_states), b1: (hidden,)  (PyTorch nn.Linear weight/bias layout)
    w2: (n_actions, hidden), b2: (n_actions,)
    returns (B, n_actions) float32
    """
    B, n_states = x.shape
    hidden = w1.shape[0]
    n_actions = w2.shape[0]

    # Lane-friendly batch tile: multiple of 128, capped at block_b.
    # Per-buffer VMEM cost ~ TB*(n_states+hidden+n_actions)*4B, tiny at these
    # feature sizes on all of v5e/v6e/v7x.
    tb = min(block_b, _round_up(B, 128))
    b_padded = _round_up(B, tb)

    compute_dtype = jnp.bfloat16 if use_bf16 else jnp.float32

    # Feature-major layout: batch on the lane (last) axis; zero-pad batch.
    xt = jnp.pad(x.T, ((0, 0), (0, b_padded - B))).astype(compute_dtype)
    w1c = w1.astype(compute_dtype)
    w2c = w2.astype(compute_dtype)
    b1c = b1.reshape(hidden, 1).astype(jnp.float32)
    b2c = b2.reshape(n_actions, 1).astype(jnp.float32)

    out_t = pl.pallas_call(
        _net_kernel,
        out_shape=jax.ShapeDtypeStruct((n_actions, b_padded), jnp.float32),
        grid_spec=pl.GridSpec(
            grid=(b_padded // tb,),
            in_specs=[
                # x tile walks the batch axis; weights/biases stay VMEM-resident.
                pl.BlockSpec((n_states, tb), lambda i: (0, i)),
                pl.BlockSpec((hidden, n_states), lambda i: (0, 0)),
                pl.BlockSpec((hidden, 1), lambda i: (0, 0)),
                pl.BlockSpec((n_actions, hidden), lambda i: (0, 0)),
                pl.BlockSpec((n_actions, 1), lambda i: (0, 0)),
            ],
            out_specs=pl.BlockSpec((n_actions, tb), lambda i: (0, i)),
        ),
        compiler_params=pltpu.CompilerParams(
            dimension_semantics=("parallel",),
        ),
    )(xt, w1c, b1c, w2c, b2c)

    # Back to PyTorch layout: (B, n_actions).
    return out_t[:, :B].T


def init_params(key, n_states, n_actions, hidden_size):
    """Deterministic init mirroring the PyTorch module (native PyTorch layouts):
       weights ~ N(0, 0.1); biases use default nn.Linear init U(-1/sqrt(fan_in), 1/sqrt(fan_in))."""
    k1, k2, k3, k4 = jax.random.split(key, 4)
    w1 = 0.1 * jax.random.normal(k1, (hidden_size, n_states), dtype=jnp.float32)
    w2 = 0.1 * jax.random.normal(k2, (n_actions, hidden_size), dtype=jnp.float32)
    bound1 = 1.0 / jnp.sqrt(jnp.float32(n_states))
    bound2 = 1.0 / jnp.sqrt(jnp.float32(hidden_size))
    b1 = jax.random.uniform(k3, (hidden_size,), dtype=jnp.float32,
                            minval=-bound1, maxval=bound1)
    b2 = jax.random.uniform(k4, (n_actions,), dtype=jnp.float32,
                            minval=-bound2, maxval=bound2)
    return w1, b1, w2, b2


if __name__ == "__main__":
    key = jax.random.PRNGKey(0)
    kx, kp = jax.random.split(key)

    batch = 256       # batched DQN path (lane-dense: batch >= 128 on lane axis)
    n_states = 4      # e.g. CartPole observation dim
    n_actions = 2
    hidden_size = 32

    x = jax.random.normal(kx, (batch, n_states), dtype=jnp.float32)
    w1, b1, w2, b2 = init_params(kp, n_states, n_actions, hidden_size)

    # Pure-JAX reference (same math as PyTorch forward).
    ref = jnp.maximum(x @ w1.T + b1, 0.0) @ w2.T + b2

    # f32 path: exact check.
    out_f32 = jax.block_until_ready(net_forward(x, w1, b1, w2, b2, use_bf16=False))
    assert out_f32.shape == (batch, n_actions)
    assert jnp.allclose(out_f32, ref, atol=1e-5, rtol=1e-5)

    # bf16 MXU-input path (f32 accumulation, f32 bias/ReLU): loose check.
    out_bf16 = jax.block_until_ready(net_forward(x, w1, b1, w2, b2, use_bf16=True))
    assert out_bf16.shape == (batch, n_actions)
    assert jnp.allclose(out_bf16, ref, atol=5e-2, rtol=5e-2)

    print("KERNEL_OK")
</pallas_src>

<mosaic_0001>
module attributes {stable_mosaic.version = 11 : i64} {
  func.func @_net_kernel(%arg0: i32, %arg1: memref<4x256xf32, #tpu.memory_space<vmem>>, %arg2: memref<32x4xf32, #tpu.memory_space<vmem>>, %arg3: memref<32x1xf32, #tpu.memory_space<vmem>>, %arg4: memref<2x32xf32, #tpu.memory_space<vmem>>, %arg5: memref<2x1xf32, #tpu.memory_space<vmem>>, %arg6: memref<2x256xf32, #tpu.memory_space<vmem>>) attributes {dimension_semantics = [#tpu.dimension_semantics<parallel>], iteration_bounds = array<i64: 1>, scalar_prefetch = 0 : i64, scratch_operands = 0 : i64, tpu.core_type = #tpu.core_type<tc>, window_params = [{transform_indices = @transform_0, window_bounds = array<i64: 4, 256>}, {pipeline_mode = #tpu.pipeline_mode<synchronous>, transform_indices = @transform_1, window_bounds = array<i64: 32, 4>}, {pipeline_mode = #tpu.pipeline_mode<synchronous>, transform_indices = @transform_2, window_bounds = array<i64: 32, 1>}, {pipeline_mode = #tpu.pipeline_mode<synchronous>, transform_indices = @transform_3, window_bounds = array<i64: 2, 32>}, {pipeline_mode = #tpu.pipeline_mode<synchronous>, transform_indices = @transform_4, window_bounds = array<i64: 2, 1>}, {transform_indices = @transform_5, window_bounds = array<i64: 2, 256>}]} {
    %c0 = arith.constant 0 : index
    %c0_0 = arith.constant 0 : index
    %0 = vector.load %arg2[%c0, %c0_0] : memref<32x4xf32, #tpu.memory_space<vmem>>, vector<32x4xf32>
    %c0_1 = arith.constant 0 : index
    %c0_2 = arith.constant 0 : index
    %1 = vector.load %arg1[%c0_1, %c0_2] : memref<4x256xf32, #tpu.memory_space<vmem>>, vector<4x256xf32>
    %cst = arith.constant dense<0.000000e+00> : vector<32x256xf32>
    %2 = tpu.matmul %0, %1, %cst {dimension_numbers = #tpu.dot_dimension_numbers<[1], [0], [0], [1], [0, 0, 1, 1], [], []>} : vector<32x4xf32>, vector<4x256xf32>, vector<32x256xf32> -> vector<32x256xf32>
    %c0_3 = arith.constant 0 : index
    %c0_4 = arith.constant 0 : index
    %3 = vector.load %arg3[%c0_3, %c0_4] : memref<32x1xf32, #tpu.memory_space<vmem>>, vector<32x1xf32>
    %4 = vector.broadcast %3 : vector<32x1xf32> to vector<32x256xf32>
    %5 = arith.addf %2, %4 : vector<32x256xf32>
    %cst_5 = arith.constant 0.000000e+00 : f32
    %6 = vector.broadcast %cst_5 : f32 to vector<32x256xf32>
    %7 = arith.maximumf %5, %6 : vector<32x256xf32>
    %c0_6 = arith.constant 0 : index
    %c0_7 = arith.constant 0 : index
    %8 = vector.load %arg4[%c0_6, %c0_7] : memref<2x32xf32, #tpu.memory_space<vmem>>, vector<2x32xf32>
    %cst_8 = arith.constant dense<0.000000e+00> : vector<2x256xf32>
    %9 = tpu.matmul %8, %7, %cst_8 {dimension_numbers = #tpu.dot_dimension_numbers<[1], [0], [0], [1], [0, 0, 1, 1], [], []>} : vector<2x32xf32>, vector<32x256xf32>, vector<2x256xf32> -> vector<2x256xf32>
    %c0_9 = arith.constant 0 : index
    %c0_10 = arith.constant 0 : index
    %10 = vector.load %arg5[%c0_9, %c0_10] : memref<2x1xf32, #tpu.memory_space<vmem>>, vector<2x1xf32>
    %11 = vector.broadcast %10 : vector<2x1xf32> to vector<2x256xf32>
    %12 = arith.addf %9, %11 : vector<2x256xf32>
    %c0_11 = arith.constant 0 : index
    %c0_12 = arith.constant 0 : index
    %13 = vector.load %arg6[%c0_11, %c0_12] : memref<2x256xf32, #tpu.memory_space<vmem>>, vector<2x256xf32>
    tpu.vector_store %arg6[%c0_11, %c0_12], %12 {strides = array<i32>} : memref<2x256xf32, #tpu.memory_space<vmem>>, vector<2x256xf32>,
    return
  }
  func.func @transform_0(%arg0: i32) -> (i32, i32) {
    %c0_i32 = arith.constant 0 : i32
    %c0_i32_0 = arith.constant 0 : i32
    return %c0_i32, %arg0 : i32, i32
  }
  func.func @transform_1(%arg0: i32) -> (i32, i32) {
    %c0_i32 = arith.constant 0 : i32
    %c0_i32_0 = arith.constant 0 : i32
    %c0_i32_1 = arith.constant 0 : i32
    return %c0_i32, %c0_i32_0 : i32, i32
  }
  func.func @transform_2(%arg0: i32) -> (i32, i32) {
    %c0_i32 = arith.constant 0 : i32
    %c0_i32_0 = arith.constant 0 : i32
    %c0_i32_1 = arith.constant 0 : i32
    return %c0_i32, %c0_i32_0 : i32, i32
  }
  func.func @transform_3(%arg0: i32) -> (i32, i32) {
    %c0_i32 = arith.constant 0 : i32
    %c0_i32_0 = arith.constant 0 : i32
    %c0_i32_1 = arith.constant 0 : i32
    return %c0_i32, %c0_i32_0 : i32, i32
  }
  func.func @transform_4(%arg0: i32) -> (i32, i32) {
    %c0_i32 = arith.constant 0 : i32
    %c0_i32_0 = arith.constant 0 : i32
    %c0_i32_1 = arith.constant 0 : i32
    return %c0_i32, %c0_i32_0 : i32, i32
  }
  func.func @transform_5(%arg0: i32) -> (i32, i32) {
    %c0_i32 = arith.constant 0 : i32
    %c0_i32_0 = arith.constant 0 : i32
    return %c0_i32, %arg0 : i32, i32
  }
}

</mosaic_0001>

<llo_original>
// kernel: tpu_custom_call.1
$region0: #{tpu_custom_call.1}
  #allocation0 [shape = 'u32[]', space=smem, size = 0x4, offset = 0x4, fixed_abs, tag = 'smem constant byte address 0x4 - core index']
  #allocation1 [shape = 'u32[144,128]{1,0:T(1,128)}', space=vmem, size = 0x12000, scoped, tag = 'internal scratch']
  %s0 = inlined_call_operand.vmem [shape: f32[4,256], index: 0, kind: input, shape index: {}]
  %s1 = inlined_call_operand.vmem [shape: f32[32,4], index: 1, kind: input, shape index: {}]
  %s2 = inlined_call_operand.vmem [shape: f32[32,1], index: 2, kind: input, shape index: {}]
  %s3 = inlined_call_operand.vmem [shape: f32[2,32], index: 3, kind: input, shape index: {}]
  %s4 = inlined_call_operand.vmem [shape: f32[2,1], index: 4, kind: input, shape index: {}]
  %s5 = inlined_call_operand.hbm [shape: f32[2,256], index: 5, kind: output, shape index: {}]
  %s6 = sld [smem:[#allocation0]]
  $region30: #{tpu_custom_call.1} parent=0
    _
  %s8 = ssub.s32 1, %s6
  %s9 = scalar_select 0, %s8, %s6
  $region1: #{tpu_custom_call.1} parent=0
    #allocation2 [shape = 'u8[2048]{0}', space=vmem, size = 0x800, scoped, tag = 'output window, operand 0, single buffered']
    #allocation3 [shape = 's32[1]{0}', space=sflag, size = 0x4, scoped, tag = 'scoped memory for tpu_custom_call.1']
    %10 = vsyncpa [#allocation3], 0
    // Predicated region
    $region2: #{tpu_custom_call.1} parent=1 // pred_check
      _
    $region3: #{tpu_custom_call.1} parent=1 // pred_check_branch
      %12 = sbr.rel (0) target = $region5
    $region4: #{tpu_custom_call.1} parent=1 // pred_region
      _
    $region5: #{tpu_custom_call.1} parent=1 // pred_fallthru
      _
    // Predicated region
    $region6: #{tpu_custom_call.1} parent=1 // pred_check
      _
    $region7: #{tpu_custom_call.1} parent=1 // pred_check_branch
      %14 = sbr.rel (0) target = $region9
    $region8: #{tpu_custom_call.1} parent=1 // pred_region
      _
    $region9: #{tpu_custom_call.1} parent=1 // pred_fallthru
      _
    // Predicated region
    $region10: #{tpu_custom_call.1} parent=1 // pred_check
      _
    $region11: #{tpu_custom_call.1} parent=1 // pred_check_branch
      %16 = sbr.rel (0) target = $region13
    $region12: #{tpu_custom_call.1} parent=1 // pred_region
      _
    $region13: #{tpu_custom_call.1} parent=1 // pred_fallthru
      _
    // Predicated region
    $region14: #{tpu_custom_call.1} parent=1 // pred_check
      _
    $region15: #{tpu_custom_call.1} parent=1 // pred_check_branch
      %18 = sbr.rel (0) target = $region17
    $region16: #{tpu_custom_call.1} parent=1 // pred_region
      _
    $region17: #{tpu_custom_call.1} parent=1 // pred_fallthru
      _
    // Predicated region
    $region18: #{tpu_custom_call.1} parent=1 // pred_check
      _
    $region19: #{tpu_custom_call.1} parent=1 // pred_check_branch
      %20 = sbr.rel (0) target = $region21
    $region20: #{tpu_custom_call.1} parent=1 // pred_region
      _
    $region21: #{tpu_custom_call.1} parent=1 // pred_fallthru
      _
    %v21 = vld [vmem:[%s1] sm:$0xff]
    %v22 = vld [vmem:[%s1 + $0x8] sm:$0xff]
    %v23 = vld [vmem:[%s1 + $0x10] sm:$0xff]
    %v24 = vld [vmem:[%s1 + $0x18] sm:$0xff]
    %v25 = vld [vmem:[%s0] sm:$0xff]
    %v26 = vld [vmem:[%s2] sm:$0xff]
    %v27 = vld [vmem:[%s2 + $0x8] sm:$0xff]
    %v28 = vld [vmem:[%s2 + $0x10] sm:$0xff]
    %v29 = vld [vmem:[%s2 + $0x18] sm:$0xff]
    %31 = vset.pattern.permute.xlu0 0
    %32 = vperm.xlu0 %31, %v26
    %v33 = vpop.permute.xlu0 %32
    %36 = vset.pattern.permute.xlu0 0
    %37 = vperm.xlu0 %36, %v27
    %v38 = vpop.permute.xlu0 %37
    %41 = vset.pattern.permute.xlu0 0
    %42 = vperm.xlu0 %41, %v28
    %v43 = vpop.permute.xlu0 %42
    %46 = vset.pattern.permute.xlu0 0
    %47 = vperm.xlu0 %46, %v29
    %v48 = vpop.permute.xlu0 %47
    %v51 = vcombine.high %v25, %v25
    %vm52 = vcmask 31744
    %v54 = vsel %vm52, %v21, 0
    %v57 = vsel %vm52, %v22, 0
    %v60 = vsel %vm52, %v23, 0
    %v63 = vsel %vm52, %v24, 0
    %vm65 = vcmask 1043456
    %v66 = vsel %vm65, %v25, 0
    %v68 = vsel %vm65, %v51, 0
    %70 = vmatprep.subr.mxu0 %v68
    %71 = vmatpush1.msra.mxu0 %v66
    %72 = vmatprep.subr.mxu0 0.0
    %73 = vmatpush1.msra.mxu0 0.0
    %74 = vmatprep.subr.mxu0 0.0
    %75 = vmatpush1.msra.mxu0 0.0
    %76 = vmatprep.subr.mxu0 0.0
    %77 = vmatpush1.msra.mxu0 0.0
    %78 = vmatprep.subr.mxu0 0.0
    %79 = vmatpush1.msra.mxu0 0.0
    %80 = vmatprep.subr.mxu0 0.0
    %81 = vmatpush1.msra.mxu0 0.0
    %82 = vmatprep.subr.mxu0 0.0
    %83 = vmatpush1.msra.mxu0 0.0
    %84 = vmatprep.subr.mxu0 0.0
    %85 = vmatpush1.msra.mxu0 0.0
    %86 = vmatprep.subr.mxu0 0.0
    %87 = vmatpush1.msra.mxu0 0.0
    %88 = vmatprep.subr.mxu0 0.0
    %89 = vmatpush1.msra.mxu0 0.0
    %90 = vmatprep.subr.mxu0 0.0
    %91 = vmatpush1.msra.mxu0 0.0
    %92 = vmatprep.subr.mxu0 0.0
    %93 = vmatpush1.msra.mxu0 0.0
    %94 = vmatprep.subr.mxu0 0.0
    %95 = vmatpush1.msra.mxu0 0.0
    %96 = vmatprep.subr.mxu0 0.0
    %97 = vmatpush1.msra.mxu0 0.0
    %98 = vmatprep.subr.mxu0 0.0
    %99 = vmatpush1.msra.mxu0 0.0
    %100 = vmatprep.subr.mxu0 0.0
    %101 = vmatpush1.msra.mxu0 0.0
    %102 = vmatprep.subr.mxu0 0.0
    %103 = vmatpush1.msra.mxu0 0.0
    %104 = vmatprep.subr.mxu0 0.0
    %105 = vmatpush1.msra.mxu0 0.0
    %106 = vmatprep.subr.mxu0 0.0
    %107 = vmatpush1.msra.mxu0 0.0
    %108 = vmatprep.subr.mxu0 0.0
    %109 = vmatpush1.msra.mxu0 0.0
    %110 = vmatprep.subr.mxu0 0.0
    %111 = vmatpush1.msra.mxu0 0.0
    %112 = vmatprep.subr.mxu0 0.0
    %113 = vmatpush1.msra.mxu0 0.0
    %114 = vmatprep.subr.mxu0 0.0
    %115 = vmatpush1.msra.mxu0 0.0
    %116 = vmatprep.subr.mxu0 0.0
    %117 = vmatpush1.msra.mxu0 0.0
    %118 = vmatprep.subr.mxu0 0.0
    %119 = vmatpush1.msra.mxu0 0.0
    %120 = vmatprep.subr.mxu0 0.0
    %121 = vmatpush1.msra.mxu0 0.0
    %122 = vmatprep.subr.mxu0 0.0
    %123 = vmatpush1.msra.mxu0 0.0
    %124 = vmatprep.subr.mxu0 0.0
    %125 = vmatpush1.msra.mxu0 0.0
    %126 = vmatprep.subr.mxu0 0.0
    %127 = vmatpush1.msra.mxu0 0.0
    %128 = vmatprep.subr.mxu0 0.0
    %129 = vmatpush1.msra.mxu0 0.0
    %130 = vmatprep.subr.mxu0 0.0
    %131 = vmatpush1.msra.mxu0 0.0
    %132 = vmatprep.subr.mxu0 0.0
    %133 = vmatpush1.msra.mxu0 0.0
    %134 = vmatprep.mubr.f32.mxu0 0.0
    %135 = vmatmul.mubr.f32.gmra.mrb[0].mxu0 %v54
    %v136 = vpop.f32.mrb[0].mxu0
    %v137 = vadd.f32 %v33, %v136
    %v138 = vpop.f32.mrb[0].mxu0
    %v139 = vadd.f32 %v33, %v138
    %140 = vmatprep.mubr.f32.mxu0 0.0
    %141 = vmatmul.mubr.f32.gmra.mrb[0].mxu0 %v57
    %v142 = vpop.f32.mrb[0].mxu0
    %v143 = vadd.f32 %v38, %v142
    %v144 = vpop.f32.mrb[0].mxu0
    %v145 = vadd.f32 %v38, %v144
    %146 = vmatprep.mubr.f32.mxu0 0.0
    %147 = vmatmul.mubr.f32.gmra.mrb[0].mxu0 %v60
    %v148 = vpop.f32.mrb[0].mxu0
    %v149 = vadd.f32 %v43, %v148
    %v150 = vpop.f32.mrb[0].mxu0
    %v151 = vadd.f32 %v43, %v150
    %152 = vmatprep.mubr.f32.mxu0 0.0
    %153 = vmatmul.mubr.f32.gmra.mrb[0].mxu0 %v63
    %v154 = vpop.f32.mrb[0].mxu0
    %v155 = vadd.f32 %v48, %v154
    %v156 = vpop.f32.mrb[0].mxu0
    %v157 = vadd.f32 %v48, %v156
    %158 = vdwg.mxu0
    %v159 = vmax.f32 %v137, 0.0
    %v160 = vmax.f32 %v139, 0.0
    %v161 = vmax.f32 %v143, 0.0
    %v162 = vmax.f32 %v145, 0.0
    %v163 = vmax.f32 %v149, 0.0
    %v164 = vmax.f32 %v151, 0.0
    %v165 = vmax.f32 %v155, 0.0
    %v166 = vmax.f32 %v157, 0.0
    %v167 = vld [vmem:[%s3] sm:$0x3]
    %v168 = vld [vmem:[%s4] sm:$0x3]
    %170 = vset.pattern.permute.xlu0 0
    %171 = vperm.xlu0 %170, %v168
    %v172 = vpop.permute.xlu0 %171
    %vm174 = vcmask 261120
    %v176 = vsel %vm174, %v167, 0
    %178 = vmatprep.subr.mxu0 %v160
    %179 = vmatpush1.msra.mxu0 %v159
    %180 = vmatprep.subr.mxu0 %v162
    %181 = vmatpush1.msra.mxu0 %v161
    %182 = vmatprep.subr.mxu0 %v164
    %183 = vmatpush1.msra.mxu0 %v163
    %184 = vmatprep.subr.mxu0 %v166
    %185 = vmatpush1.msra.mxu0 %v165
    %186 = vmatprep.subr.mxu0 0.0
    %187 = vmatpush1.msra.mxu0 0.0
    %188 = vmatprep.subr.mxu0 0.0
    %189 = vmatpush1.msra.mxu0 0.0
    %190 = vmatprep.subr.mxu0 0.0
    %191 = vmatpush1.msra.mxu0 0.0
    %192 = vmatprep.subr.mxu0 0.0
    %193 = vmatpush1.msra.mxu0 0.0
    %194 = vmatprep.subr.mxu0 0.0
    %195 = vmatpush1.msra.mxu0 0.0
    %196 = vmatprep.subr.mxu0 0.0
    %197 = vmatpush1.msra.mxu0 0.0
    %198 = vmatprep.subr.mxu0 0.0
    %199 = vmatpush1.msra.mxu0 0.0
    %200 = vmatprep.subr.mxu0 0.0
    %201 = vmatpush1.msra.mxu0 0.0
    %202 = vmatprep.subr.mxu0 0.0
    %203 = vmatpush1.msra.mxu0 0.0
    %204 = vmatprep.subr.mxu0 0.0
    %205 = vmatpush1.msra.mxu0 0.0
    %206 = vmatprep.subr.mxu0 0.0
    %207 = vmatpush1.msra.mxu0 0.0
    %208 = vmatprep.subr.mxu0 0.0
    %209 = vmatpush1.msra.mxu0 0.0
    %210 = vmatprep.subr.mxu0 0.0
    %211 = vmatpush1.msra.mxu0 0.0
    %212 = vmatprep.subr.mxu0 0.0
    %213 = vmatpush1.msra.mxu0 0.0
    %214 = vmatprep.subr.mxu0 0.0
    %215 = vmatpush1.msra.mxu0 0.0
    %216 = vmatprep.subr.mxu0 0.0
    %217 = vmatpush1.msra.mxu0 0.0
    %218 = vmatprep.subr.mxu0 0.0
    %219 = vmatpush1.msra.mxu0 0.0
    %220 = vmatprep.subr.mxu0 0.0
    %221 = vmatpush1.msra.mxu0 0.0
    %222 = vmatprep.subr.mxu0 0.0
    %223 = vmatpush1.msra.mxu0 0.0
    %224 = vmatprep.subr.mxu0 0.0
    %225 = vmatpush1.msra.mxu0 0.0
    %226 = vmatprep.subr.mxu0 0.0
    %227 = vmatpush1.msra.mxu0 0.0
    %228 = vmatprep.subr.mxu0 0.0
    %229 = vmatpush1.msra.mxu0 0.0
    %230 = vmatprep.subr.mxu0 0.0
    %231 = vmatpush1.msra.mxu0 0.0
    %232 = vmatprep.subr.mxu0 0.0
    %233 = vmatpush1.msra.mxu0 0.0
    %234 = vmatprep.subr.mxu0 0.0
    %235 = vmatpush1.msra.mxu0 0.0
    %236 = vmatprep.subr.mxu0 0.0
    %237 = vmatpush1.msra.mxu0 0.0
    %238 = vmatprep.subr.mxu0 0.0
    %239 = vmatpush1.msra.mxu0 0.0
    %240 = vmatprep.subr.mxu0 0.0
    %241 = vmatpush1.msra.mxu0 0.0
    %242 = vmatprep.mubr.f32.mxu0 0.0
    %243 = vmatmul.mubr.f32.gmra.mrb[0].mxu0 %v176
    %v244 = vpop.f32.mrb[0].mxu0
    %v245 = vadd.f32 %v172, %v244
    %v246 = vpop.f32.mrb[0].mxu0
    %v247 = vadd.f32 %v172, %v246
    %248 = vdwg.mxu0
    %v251 = vcombine.low %v245, %v247
    %v253 = vunpack.c.l.s4 1983009808
    %v254 = vunpack.c.0.s8 %v253
    %v255 = vlaneseq
    %v256 = vshrl.u32 %v255, 7
    %v257 = vsub.s32 %v254, %v256
    %v258 = vrot.slane %v251, %v257
    %260 = vst [vmem:[#allocation2] sm:$0xf] %v258
    // Predicated region
    $region22: #{tpu_custom_call.1} parent=1 // pred_check
      _
    $region23: #{tpu_custom_call.1} parent=1 // pred_check_branch
      %262 = sbr.rel (0) target = $region25
    $region24: #{tpu_custom_call.1} parent=1 // pred_region
      %s264 = ssub.s32 64, 64
      %265 = vsyncadd [#allocation3], %s264
      %s267 = sshll.u32 [#allocation2], 4
      %s268 = int_to_ptr.vmem [resolvable:$true] %s267
      %270 = dma.vmem_to_hbm [thread:$0]  %s268, 64, %s5, [#allocation3]
    $region25: #{tpu_custom_call.1} parent=1 // pred_fallthru
      _
    // Predicated region
    $region26: #{tpu_custom_call.1} parent=1 // pred_check
      _
    $region27: #{tpu_custom_call.1} parent=1 // pred_check_branch
      %272 = sbr.rel (0) target = $region29
    $region28: #{tpu_custom_call.1} parent=1 // pred_region
      %273 = dma.done [#allocation3], 64
    $region29: #{tpu_custom_call.1} parent=1 // pred_fallthru
      _
    %274 = vsyncpa [#allocation3], 1

</llo_original>
